<compile_context>
chip_gen: v7x
topology: tpu7x:2x2x1
jax: 0.10.0
libtpu: 0.0.40
codegen_flags: <defaults>
</compile_context>

<pallas_src>
import functools

import jax
import jax.numpy as jnp
import numpy as np
from jax.experimental import pallas as pl
from jax.experimental.pallas import tpu as pltpu


def _pn_head_kernel(scale_ref, test_ref, train_ref, out_ref, *, way, shot):
    """Cosine prototypical-network logits for a tile of batch elements.

    scale_ref: (1,) f32                  SMEM (scalar prefetch)
    test_ref : (b_tile, num_query, C)    VMEM, input dtype (f32 or bf16)
    train_ref: (b_tile, way*shot, C)     VMEM, input dtype
    out_ref  : (b_tile, way, num_query)  VMEM, f32 (lane-dense: num_query on lanes)
    """
    # F.normalize(x, p=2, dim=-1, eps=1e-12) == x * rsqrt(max(sum(x*x), eps**2))
    # (sqrt is monotone, so clamping the sum-of-squares at eps^2 is equivalent
    #  to clamping the norm at eps).  1e-24 is a normal f32 value.
    eps_sq = jnp.float32(1e-24)
    mxu_dtype = train_ref.dtype            # keep MXU operands in the input dtype
    bt = train_ref.shape[0]
    n_support = way * shot

    # --- normalize support features: factors in f32 (EUP rsqrt + VPU mul),
    #     normalized tensor cast back to the input dtype for the MXU ---
    train_f32 = train_ref[...].astype(jnp.float32)          # (bt, way*shot, C)
    tr_fac = jax.lax.rsqrt(
        jnp.maximum(jnp.sum(train_f32 * train_f32, axis=-1, keepdims=True), eps_sq))
    train_n = (train_f32 * tr_fac).astype(mxu_dtype)

    # --- prototypes: per-class sum over shots as ONE small batched MXU matmul
    #     against a 0/1 selection matrix (exact in any dtype); the 1/shot mean
    #     factor is applied in f32 afterwards.  Support ordering [abcd abcd..]
    #     => sel[w, j] = 1 iff j % way == w.  Built from static iotas (a few
    #     VPU ops on one vreg). ---
    rows = jax.lax.broadcasted_iota(jnp.int32, (way, n_support), 0)
    cols = jax.lax.broadcasted_iota(jnp.int32, (way, n_support), 1)
    sel = jnp.where(cols % way == rows,
                    jnp.ones((), mxu_dtype), jnp.zeros((), mxu_dtype))
    sel_b = jnp.broadcast_to(sel[None, :, :], (bt, way, n_support))
    proto = jnp.einsum('bws,bsc->bwc', sel_b, train_n,
                       preferred_element_type=jnp.float32)   # (bt, way, C) f32
    proto = proto * jnp.float32(1.0 / shot)

    # --- normalize prototypes ---
    p_fac = jax.lax.rsqrt(
        jnp.maximum(jnp.sum(proto * proto, axis=-1, keepdims=True), eps_sq))
    proto_n = (proto * p_fac).astype(mxu_dtype)

    # --- normalize query features; fold scale_cls into the factor so the
    #     final "scale * scores" multiply disappears ---
    test_f32 = test_ref[...].astype(jnp.float32)             # (bt, num_query, C)
    te_fac = jax.lax.rsqrt(
        jnp.maximum(jnp.sum(test_f32 * test_f32, axis=-1, keepdims=True), eps_sq))
    test_n = (test_f32 * (te_fac * scale_ref[0])).astype(mxu_dtype)

    # --- scaled cosine similarity on the MXU, emitted as (bt, way, num_query)
    #     so num_query (the larger dim) is on the lane axis -> lane-dense
    #     stores / writeback DMA.  Wrapper transposes back. ---
    scores = jnp.einsum('bwc,bqc->bwq', proto_n, test_n,
                        preferred_element_type=jnp.float32)
    out_ref[...] = scores.astype(out_ref.dtype)


def _num_tensorcores():
    """Best-effort TensorCores-per-device count (only used as a tiling hint)."""
    try:
        kind = (getattr(jax.devices()[0], "device_kind", "") or "").lower()
        if "v7" in kind or "v4" in kind or "v5p" in kind:
            return 2          # 2-TC / megacore chips: prefer an even grid
    except Exception:
        pass
    return 1


def _choose_tiling(batch_size, per_b_bytes, budget_bytes, num_cores):
    """VMEM-driven batch tile; pads batch so every grid step is full."""
    max_tile = max(1, min(batch_size, budget_bytes // max(per_b_bytes, 1)))
    steps = -(-batch_size // max_tile)                 # ceil
    if num_cores > 1 and batch_size >= num_cores:
        steps = -(-steps // num_cores) * num_cores     # even grid for 2-TC chips
    b_tile = -(-batch_size // steps)                   # <= max_tile by construction
    return b_tile, steps, b_tile * steps


def pn_head_forward(features_test, features_train, way, shot, scale_cls,
                    metric="cosine"):
    """JAX/Pallas equivalent of PN_head.forward (cosine metric).

    features_test : [B, num_query, C, H, W] or [B, num_query, C]
    features_train: [B, way*shot, C, H, W]  or [B, way*shot, C]
                    (support ordering [abcd abcd ...], class index fastest)
    returns       : [B, num_query, way] float32
    """
    assert metric == "cosine"  # TODO(synk): 'enclidean' branch (L2SquareDist) not implemented
    # Glue: adaptive_avg_pool2d(., 1).squeeze -> mean over spatial dims.
    # TODO(synk): fusing the spatial pool into the kernel needs a channels-last
    # relayout of the NCHW maps to keep C on the lane axis; kept as plain JAX.
    if features_train.ndim == 5:
        features_train = jnp.mean(features_train, axis=(-2, -1))
    if features_test.ndim == 5:
        features_test = jnp.mean(features_test, axis=(-2, -1))
    assert features_train.ndim == 3 and features_test.ndim == 3

    batch_size, num_query, c = features_test.shape
    n_support = features_train.shape[1]
    assert n_support == way * shot
    assert features_train.shape[0] == batch_size and features_train.shape[2] == c

    in_dtype = features_test.dtype
    itm = jnp.dtype(in_dtype).itemsize

    # Per-batch-element VMEM working set (double-buffered input DMA buffers,
    # f32 compute intermediates, prototypes, double-buffered output) kept
    # under ~20 MiB of the 32 MiB scoped-VMEM limit requested below (valid on
    # v5e / v6e / v7x; v7x has 64 MiB physical per TC).
    per_b = (2 * (num_query + n_support) * c * itm     # input double-buffers
             + 2 * (num_query + n_support) * c * 4     # f32 working copies
             + 3 * way * c * 4                         # prototypes
             + 3 * way * num_query * 4)                # scores + out buffers
    budget = 20 * 1024 * 1024
    b_tile, steps, padded_batch = _choose_tiling(
        batch_size, per_b, budget, _num_tensorcores())

    if padded_batch != batch_size:
        pad = padded_batch - batch_size               # zero rows are inert here
        features_test = jnp.pad(features_test, ((0, pad), (0, 0), (0, 0)))
        features_train = jnp.pad(features_train, ((0, pad), (0, 0), (0, 0)))

    scale_arr = jnp.asarray(scale_cls, jnp.float32).reshape((1,))
    kernel = functools.partial(_pn_head_kernel, way=way, shot=shot)

    grid_spec = pltpu.PrefetchScalarGridSpec(
        num_scalar_prefetch=1,
        grid=(steps,),
        in_specs=[
            pl.BlockSpec((b_tile, num_query, c), lambda b, scale: (b, 0, 0)),
            pl.BlockSpec((b_tile, n_support, c), lambda b, scale: (b, 0, 0)),
        ],
        out_specs=pl.BlockSpec((b_tile, way, num_query),
                               lambda b, scale: (b, 0, 0)),
    )

    cost = pl.CostEstimate(
        flops=2 * padded_batch * c * way * (n_support + num_query),
        transcendentals=padded_batch * (n_support + way + num_query),
        bytes_accessed=(padded_batch * (num_query + n_support) * c * itm
                        + padded_batch * way * num_query * 4),
    )

    out_wq = pl.pallas_call(
        kernel,
        out_shape=jax.ShapeDtypeStruct((padded_batch, way, num_query),
                                       jnp.float32),
        grid_spec=grid_spec,
        compiler_params=pltpu.CompilerParams(
            dimension_semantics=("parallel",),
            vmem_limit_bytes=32 * 1024 * 1024),
        cost_estimate=cost,
    )(scale_arr, features_test, features_train)

    # Kernel output is (B, way, num_query) for lane-dense stores; present the
    # module's (B, num_query, way).  The transpose is on a tiny array.
    return jnp.swapaxes(out_wq[:batch_size], 1, 2)


def _reference_jax(features_test, features_train, way, shot, scale_cls):
    """Pure-JAX reference mirroring the PyTorch forward (cosine metric)."""
    eps = 1e-12
    ft_train = jnp.mean(features_train, axis=(-2, -1))
    ft_test = jnp.mean(features_test, axis=(-2, -1))
    b = ft_train.shape[0]
    ft_train = ft_train / jnp.maximum(
        jnp.linalg.norm(ft_train, axis=2, keepdims=True), eps)
    protos = jnp.mean(ft_train.reshape(b, shot, way, -1), axis=1)
    protos = protos / jnp.maximum(
        jnp.linalg.norm(protos, axis=2, keepdims=True), eps)
    ft_test = ft_test / jnp.maximum(
        jnp.linalg.norm(ft_test, axis=2, keepdims=True), eps)
    return scale_cls * jnp.einsum("bqc,bwc->bqw", ft_test, protos)


if __name__ == "__main__":
    def run_case(key, batch, num_query, C, H, W, way, shot, scale_cls):
        k1, k2 = jax.random.split(key)
        ftest = jax.random.normal(k1, (batch, num_query, C, H, W), jnp.float32)
        ftrain = jax.random.normal(k2, (batch, way * shot, C, H, W), jnp.float32)
        out = jax.block_until_ready(
            pn_head_forward(ftest, ftrain, way, shot, scale_cls))
        assert out.shape == (batch, num_query, way)
        ref = _reference_jax(ftest, ftrain, way, shot, scale_cls)
        np.testing.assert_allclose(np.asarray(out), np.asarray(ref),
                                   rtol=1e-4, atol=1e-4)

    key = jax.random.PRNGKey(0)
    k1, k2 = jax.random.split(key)
    # Standard small episode.
    run_case(k1, batch=4, num_query=8, C=32, H=4, W=4, way=4, shot=2,
             scale_cls=10.0)
    # Awkward batch / way / shot (exercises the padding path on 2-TC chips).
    run_case(k2, batch=3, num_query=7, C=48, H=3, W=3, way=5, shot=3,
             scale_cls=7.5)
    print("KERNEL_OK")
</pallas_src>

<mosaic_0001>
module attributes {stable_mosaic.version = 11 : i64} {
  func.func @_pn_head_kernel(%arg0: i32, %arg1: memref<1xf32, #tpu.memory_space<smem>>, %arg2: memref<4x8x32xf32, #tpu.memory_space<vmem>>, %arg3: memref<4x8x32xf32, #tpu.memory_space<vmem>>, %arg4: memref<4x4x8xf32, #tpu.memory_space<vmem>>) attributes {dimension_semantics = [#tpu.dimension_semantics<parallel>], iteration_bounds = array<i64: 1>, scalar_prefetch = 1 : i64, scratch_operands = 0 : i64, tpu.core_type = #tpu.core_type<tc>, window_params = [{transform_indices = @transform_0, window_bounds = array<i64: 4, 8, 32>}, {transform_indices = @transform_1, window_bounds = array<i64: 4, 8, 32>}, {transform_indices = @transform_2, window_bounds = array<i64: 4, 4, 8>}]} {
    %c0 = arith.constant 0 : index
    %c0_0 = arith.constant 0 : index
    %c0_1 = arith.constant 0 : index
    %0 = vector.load %arg3[%c0, %c0_0, %c0_1] : memref<4x8x32xf32, #tpu.memory_space<vmem>>, vector<4x8x32xf32>
    %1 = arith.mulf %0, %0 : vector<4x8x32xf32>
    %cst = arith.constant dense<0.000000e+00> : vector<4x8xf32>
    %2 = vector.multi_reduction <add>, %1, %cst [2] : vector<4x8x32xf32> to vector<4x8xf32>
    %3 = vector.shape_cast %2 : vector<4x8xf32> to vector<4x8x1xf32>
    %cst_2 = arith.constant 1.000000e-24 : f32
    %4 = vector.broadcast %cst_2 : f32 to vector<4x8x1xf32>
    %5 = arith.maximumf %3, %4 : vector<4x8x1xf32>
    %6 = math.rsqrt %5 : vector<4x8x1xf32>
    %7 = vector.broadcast %6 : vector<4x8x1xf32> to vector<4x8x32xf32>
    %8 = arith.mulf %0, %7 : vector<4x8x32xf32>
    %9 = tpu.iota {dimensions = array<i32: 0>} : vector<4x8xi32>
    %10 = tpu.iota {dimensions = array<i32: 1>} : vector<4x8xi32>
    %c4_i32 = arith.constant 4 : i32
    %c0_i32 = arith.constant 0 : i32
    %11 = arith.cmpi eq, %c4_i32, %c0_i32 : i32
    %c1_i32 = arith.constant 1 : i32
    %12 = arith.select %11, %c1_i32, %c4_i32 : i32
    %13 = vector.broadcast %12 : i32 to vector<4x8xi32>
    %14 = arith.remsi %10, %13 : vector<4x8xi32>
    %c0_i32_3 = arith.constant 0 : i32
    %15 = vector.broadcast %c0_i32_3 : i32 to vector<4x8xi32>
    %16 = arith.cmpi ne, %14, %15 : vector<4x8xi32>
    %c0_i32_4 = arith.constant 0 : i32
    %17 = vector.broadcast %c0_i32_4 : i32 to vector<4x8xi32>
    %18 = arith.cmpi slt, %14, %17 : vector<4x8xi32>
    %c0_i32_5 = arith.constant 0 : i32
    %19 = arith.cmpi slt, %12, %c0_i32_5 : i32
    %20 = vector.broadcast %19 : i1 to vector<4x8xi1>
    %21 = vector.broadcast %20 : vector<4x8xi1> to vector<4x8xi1>
    %22 = arith.xori %18, %21 : vector<4x8xi1>
    %23 = arith.andi %22, %16 : vector<4x8xi1>
    %24 = vector.broadcast %12 : i32 to vector<4x8xi32>
    %25 = arith.addi %14, %24 : vector<4x8xi32>
    %26 = arith.select %23, %25, %14 : vector<4x8xi1>, vector<4x8xi32>
    %27 = arith.cmpi eq, %26, %9 : vector<4x8xi32>
    %cst_6 = arith.constant 1.000000e+00 : f32
    %cst_7 = arith.constant 0.000000e+00 : f32
    %28 = vector.broadcast %cst_6 : f32 to vector<4x8xf32>
    %29 = vector.broadcast %cst_7 : f32 to vector<4x8xf32>
    %30 = arith.select %27, %28, %29 : vector<4x8xi1>, vector<4x8xf32>
    %31 = vector.shape_cast %30 : vector<4x8xf32> to vector<1x4x8xf32>
    %32 = vector.shape_cast %31 : vector<1x4x8xf32> to vector<1x4x8xf32>
    %33 = vector.broadcast %32 : vector<1x4x8xf32> to vector<4x4x8xf32>
    "tpu.trace_start"() <{level = 10 : i32, message = "bws,bsc->bwc"}> : () -> ()
    %cst_8 = arith.constant dense<0.000000e+00> : vector<4x4x32xf32>
    %34 = tpu.matmul %33, %8, %cst_8 {dimension_numbers = #tpu.dot_dimension_numbers<[2], [1], [1], [2], [0, 0, 0, 1, 1, 2], [0], [0]>} : vector<4x4x8xf32>, vector<4x8x32xf32>, vector<4x4x32xf32> -> vector<4x4x32xf32>
    "tpu.trace_stop"() : () -> ()
    %cst_9 = arith.constant 5.000000e-01 : f32
    %35 = vector.broadcast %cst_9 : f32 to vector<4x4x32xf32>
    %36 = arith.mulf %34, %35 : vector<4x4x32xf32>
    %37 = arith.mulf %36, %36 : vector<4x4x32xf32>
    %cst_10 = arith.constant dense<0.000000e+00> : vector<4x4xf32>
    %38 = vector.multi_reduction <add>, %37, %cst_10 [2] : vector<4x4x32xf32> to vector<4x4xf32>
    %39 = vector.shape_cast %38 : vector<4x4xf32> to vector<4x4x1xf32>
    %cst_11 = arith.constant 1.000000e-24 : f32
    %40 = vector.broadcast %cst_11 : f32 to vector<4x4x1xf32>
    %41 = arith.maximumf %39, %40 : vector<4x4x1xf32>
    %42 = math.rsqrt %41 : vector<4x4x1xf32>
    %43 = vector.broadcast %42 : vector<4x4x1xf32> to vector<4x4x32xf32>
    %44 = arith.mulf %36, %43 : vector<4x4x32xf32>
    %c0_12 = arith.constant 0 : index
    %c0_13 = arith.constant 0 : index
    %c0_14 = arith.constant 0 : index
    %45 = vector.load %arg2[%c0_12, %c0_13, %c0_14] : memref<4x8x32xf32, #tpu.memory_space<vmem>>, vector<4x8x32xf32>
    %46 = arith.mulf %45, %45 : vector<4x8x32xf32>
    %cst_15 = arith.constant dense<0.000000e+00> : vector<4x8xf32>
    %47 = vector.multi_reduction <add>, %46, %cst_15 [2] : vector<4x8x32xf32> to vector<4x8xf32>
    %48 = vector.shape_cast %47 : vector<4x8xf32> to vector<4x8x1xf32>
    %cst_16 = arith.constant 1.000000e-24 : f32
    %49 = vector.broadcast %cst_16 : f32 to vector<4x8x1xf32>
    %50 = arith.maximumf %48, %49 : vector<4x8x1xf32>
    %51 = math.rsqrt %50 : vector<4x8x1xf32>
    %c0_17 = arith.constant 0 : index
    %52 = memref.load %arg1[%c0_17] : memref<1xf32, #tpu.memory_space<smem>>
    %53 = vector.broadcast %52 : f32 to vector<4x8x1xf32>
    %54 = arith.mulf %51, %53 : vector<4x8x1xf32>
    %55 = vector.broadcast %54 : vector<4x8x1xf32> to vector<4x8x32xf32>
    %56 = arith.mulf %45, %55 : vector<4x8x32xf32>
    "tpu.trace_start"() <{level = 10 : i32, message = "bwc,bqc->bwq"}> : () -> ()
    %cst_18 = arith.constant dense<0.000000e+00> : vector<4x4x8xf32>
    %57 = tpu.matmul %44, %56, %cst_18 {dimension_numbers = #tpu.dot_dimension_numbers<[2], [2], [1], [1], [0, 0, 0, 1, 1, 1], [0], [0]>} : vector<4x4x32xf32>, vector<4x8x32xf32>, vector<4x4x8xf32> -> vector<4x4x8xf32>
    "tpu.trace_stop"() : () -> ()
    %c0_19 = arith.constant 0 : index
    %c0_20 = arith.constant 0 : index
    %c0_21 = arith.constant 0 : index
    %58 = vector.load %arg4[%c0_19, %c0_20, %c0_21] : memref<4x4x8xf32, #tpu.memory_space<vmem>>, vector<4x4x8xf32>
    tpu.vector_store %arg4[%c0_19, %c0_20, %c0_21], %57 {strides = array<i32>} : memref<4x4x8xf32, #tpu.memory_space<vmem>>, vector<4x4x8xf32>,
    return
  }
  func.func @transform_0(%arg0: i32, %arg1: memref<1xf32, #tpu.memory_space<smem>>) -> (i32, i32, i32) {
    %c0_i32 = arith.constant 0 : i32
    %c0_i32_0 = arith.constant 0 : i32
    %c0_i32_1 = arith.constant 0 : i32
    return %arg0, %c0_i32, %c0_i32_0 : i32, i32, i32
  }
  func.func @transform_1(%arg0: i32, %arg1: memref<1xf32, #tpu.memory_space<smem>>) -> (i32, i32, i32) {
    %c0_i32 = arith.constant 0 : i32
    %c0_i32_0 = arith.constant 0 : i32
    %c0_i32_1 = arith.constant 0 : i32
    return %arg0, %c0_i32, %c0_i32_0 : i32, i32, i32
  }
  func.func @transform_2(%arg0: i32, %arg1: memref<1xf32, #tpu.memory_space<smem>>) -> (i32, i32, i32) {
    %c0_i32 = arith.constant 0 : i32
    %c0_i32_0 = arith.constant 0 : i32
    %c0_i32_1 = arith.constant 0 : i32
    return %arg0, %c0_i32, %c0_i32_0 : i32, i32, i32
  }
}

</mosaic_0001>

<llo_original>
// kernel: tpu_custom_call.1
$region0: #{tpu_custom_call.1}
  #allocation0 [shape = 'u32[]', space=smem, size = 0x4, offset = 0x4, fixed_abs, tag = 'smem constant byte address 0x4 - core index']
  #allocation1 [shape = 'u32[144,128]{1,0:T(1,128)}', space=vmem, size = 0x12000, scoped, tag = 'internal scratch']
  #allocation2 [shape = 's32[1]{0}', space=sflag, size = 0x4, scoped, tag = 'scoped memory for tpu_custom_call.1']
  #allocation3 [shape = 'f32[1]{0:T(128)S(6)}', space=smem, size = 0x200, scoped, tag = 'prefetched SMEM operand 0']
  %s0 = inlined_call_operand.<no memory space> [shape: f32[1], index: 0, kind: input, shape index: {}]
  %s1 = inlined_call_operand.hbm [shape: f32[4,8,32], index: 1, kind: input, shape index: {}]
  %s2 = inlined_call_operand.hbm [shape: f32[4,8,32], index: 2, kind: input, shape index: {}]
  %s3 = inlined_call_operand.hbm [shape: f32[4,4,8], index: 3, kind: output, shape index: {}]
  %s4 = sld [smem:[#allocation0]]
  $region26: #{tpu_custom_call.1} parent=0
    _
  %s6 = ssub.s32 1, %s4
  %s7 = scalar_select 0, %s6, %s4
  %8 = sst [smem:[#allocation3]] %s0
  $region1: #{tpu_custom_call.1} parent=0
    #allocation4 [shape = 'u8[16384]{0}', space=vmem, size = 0x4000, scoped, tag = 'input window, operand 1, single buffered']
    #allocation5 [shape = 's32[1]{0}', space=sflag, size = 0x4, scoped, tag = 'scoped memory for tpu_custom_call.1']
    #allocation6 [shape = 's32[1]{0}', space=sflag, size = 0x4, scoped, tag = 'scoped memory for tpu_custom_call.1']
    #allocation7 [shape = 'u8[16384]{0}', space=vmem, size = 0x4000, scoped, tag = 'input window, operand 2, single buffered']
    #allocation8 [shape = 's32[1]{0}', space=sflag, size = 0x4, scoped, tag = 'scoped memory for tpu_custom_call.1']
    #allocation9 [shape = 'u8[8192]{0}', space=vmem, size = 0x2000, scoped, tag = 'output window, operand 0, single buffered']
    %9 = vsyncpa [#allocation5], 0
    %10 = vsyncpa [#allocation8], 0
    %11 = vsyncpa [#allocation6], 0
    // Predicated region
    $region2: #{tpu_custom_call.1} parent=1 // pred_check
      _
    $region3: #{tpu_custom_call.1} parent=1 // pred_check_branch
      %13 = sbr.rel (0) target = $region5
    $region4: #{tpu_custom_call.1} parent=1 // pred_region
      %s15 = ssub.s32 512, 512
      %16 = vsyncadd [#allocation5], %s15
      %s17 = sshll.u32 [#allocation4], 4
      %s18 = int_to_ptr.vmem [resolvable:$true] %s17
      %23 = dma.hbm_to_vmem [thread:$0]  %s1, 512, %s18, [#allocation5], 128, 128, 8
    $region5: #{tpu_custom_call.1} parent=1 // pred_fallthru
      _
    // Predicated region
    $region6: #{tpu_custom_call.1} parent=1 // pred_check
      _
    $region7: #{tpu_custom_call.1} parent=1 // pred_check_branch
      %25 = sbr.rel (0) target = $region9
    $region8: #{tpu_custom_call.1} parent=1 // pred_region
      %s27 = ssub.s32 512, 512
      %28 = vsyncadd [#allocation8], %s27
      %s29 = sshll.u32 [#allocation7], 4
      %s30 = int_to_ptr.vmem [resolvable:$true] %s29
      %35 = dma.hbm_to_vmem [thread:$0]  %s2, 512, %s30, [#allocation8], 128, 128, 8
    $region9: #{tpu_custom_call.1} parent=1 // pred_fallthru
      _
    // Predicated region
    $region10: #{tpu_custom_call.1} parent=1 // pred_check
      _
    $region11: #{tpu_custom_call.1} parent=1 // pred_check_branch
      %37 = sbr.rel (0) target = $region13
    $region12: #{tpu_custom_call.1} parent=1 // pred_region
      %38 = dma.done [#allocation5], 512
    $region13: #{tpu_custom_call.1} parent=1 // pred_fallthru
      _
    // Predicated region
    $region14: #{tpu_custom_call.1} parent=1 // pred_check
      _
    $region15: #{tpu_custom_call.1} parent=1 // pred_check_branch
      %40 = sbr.rel (0) target = $region17
    $region16: #{tpu_custom_call.1} parent=1 // pred_region
      %41 = dma.done [#allocation8], 512
    $region17: #{tpu_custom_call.1} parent=1 // pred_fallthru
      _
    %v42 = vld [vmem:[#allocation7] sm:$0xff]
    %v43 = vld [vmem:[#allocation7 + $0x8] sm:$0xff]
    %v44 = vld [vmem:[#allocation7 + $0x10] sm:$0xff]
    %v45 = vld [vmem:[#allocation7 + $0x18] sm:$0xff]
    %v46 = vmul.f32 %v42, %v42
    %v47 = vmul.f32 %v43, %v43
    %v48 = vmul.f32 %v44, %v44
    %v49 = vmul.f32 %v45, %v45
    %vm50 = vcmask 261120
    %v51 = vsel %vm50, %v46, 0.0
    %52 = vadd.xlane.f32.xlu0 %v51
    %v53 = vpop.xlane.xlu0 %52
    %v54 = vsel %vm50, %v47, 0.0
    %55 = vadd.xlane.f32.xlu0 %v54
    %v56 = vpop.xlane.xlu0 %55
    %v57 = vsel %vm50, %v48, 0.0
    %58 = vadd.xlane.f32.xlu0 %v57
    %v59 = vpop.xlane.xlu0 %58
    %v60 = vsel %vm50, %v49, 0.0
    %61 = vadd.xlane.f32.xlu0 %v60
    %v62 = vpop.xlane.xlu0 %61
    %v63 = vmax.f32 %v53, 1e-24
    %v64 = vmax.f32 %v56, 1e-24
    %v65 = vmax.f32 %v59, 1e-24
    %v66 = vmax.f32 %v62, 1e-24
    %v67 = vrsqrt.pop %v63
    %v68 = vrsqrt.pop %v64
    %v69 = vrsqrt.pop %v65
    %v70 = vrsqrt.pop %v66
    %v71 = vmul.f32 %v42, %v67
    %v72 = vmul.f32 %v43, %v68
    %v73 = vmul.f32 %v44, %v69
    %v74 = vmul.f32 %v45, %v70
    %v75 = vlaneseq
    %v76 = vshrl.u32 %v75, 7
    %v77 = vlaneseq
    %v78 = vand.u32 %v77, 127
    %vm79 = vcmp.lt.s32.totalorder %v78, 0
    %v80 = vsub.s32 0, %v78
    %v81 = vsel %vm79, %v80, %v78
    %v82 = vshrl.u32 %v81, 2
    %v83 = vand.u32 %v81, 3
    %v84 = vsub.s32 0, %v83
    %v85 = vsel %vm79, %v84, %v83
    %vm86 = vcmp.ne.s32.totalorder %v85, 0
    %vm87 = vcmp.lt.s32.totalorder %v85, 0
    %vm88 = vmand %vm87, %vm86
    %v89 = vadd.s32 %v85, 4
    %v90 = vsel %vm88, %v89, %v85
    %vm91 = vcmp.eq.s32.totalorder %v90, %v76
    %v92 = vsel %vm91, 1.0, 0.0
    %vm93 = vcmask 64512
    %v95 = vsel %vm93, %v92, 0
    %97 = vmatprep.subr.mxu0 0.0
    %98 = vmatpush1.msra.mxu0 %v71
    %99 = vmatprep.subr.mxu0 0.0
    %100 = vmatpush1.msra.mxu0 0.0
    %101 = vmatprep.subr.mxu0 0.0
    %102 = vmatpush1.msra.mxu0 0.0
    %103 = vmatprep.subr.mxu0 0.0
    %104 = vmatpush1.msra.mxu0 0.0
    %105 = vmatprep.subr.mxu0 0.0
    %106 = vmatpush1.msra.mxu0 0.0
    %107 = vmatprep.subr.mxu0 0.0
    %108 = vmatpush1.msra.mxu0 0.0
    %109 = vmatprep.subr.mxu0 0.0
    %110 = vmatpush1.msra.mxu0 0.0
    %111 = vmatprep.subr.mxu0 0.0
    %112 = vmatpush1.msra.mxu0 0.0
    %113 = vmatprep.subr.mxu0 0.0
    %114 = vmatpush1.msra.mxu0 0.0
    %115 = vmatprep.subr.mxu0 0.0
    %116 = vmatpush1.msra.mxu0 0.0
    %117 = vmatprep.subr.mxu0 0.0
    %118 = vmatpush1.msra.mxu0 0.0
    %119 = vmatprep.subr.mxu0 0.0
    %120 = vmatpush1.msra.mxu0 0.0
    %121 = vmatprep.subr.mxu0 0.0
    %122 = vmatpush1.msra.mxu0 0.0
    %123 = vmatprep.subr.mxu0 0.0
    %124 = vmatpush1.msra.mxu0 0.0
    %125 = vmatprep.subr.mxu0 0.0
    %126 = vmatpush1.msra.mxu0 0.0
    %127 = vmatprep.subr.mxu0 0.0
    %128 = vmatpush1.msra.mxu0 0.0
    %129 = vmatprep.subr.mxu0 0.0
    %130 = vmatpush1.msra.mxu0 0.0
    %131 = vmatprep.subr.mxu0 0.0
    %132 = vmatpush1.msra.mxu0 0.0
    %133 = vmatprep.subr.mxu0 0.0
    %134 = vmatpush1.msra.mxu0 0.0
    %135 = vmatprep.subr.mxu0 0.0
    %136 = vmatpush1.msra.mxu0 0.0
    %137 = vmatprep.subr.mxu0 0.0
    %138 = vmatpush1.msra.mxu0 0.0
    %139 = vmatprep.subr.mxu0 0.0
    %140 = vmatpush1.msra.mxu0 0.0
    %141 = vmatprep.subr.mxu0 0.0
    %142 = vmatpush1.msra.mxu0 0.0
    %143 = vmatprep.subr.mxu0 0.0
    %144 = vmatpush1.msra.mxu0 0.0
    %145 = vmatprep.subr.mxu0 0.0
    %146 = vmatpush1.msra.mxu0 0.0
    %147 = vmatprep.subr.mxu0 0.0
    %148 = vmatpush1.msra.mxu0 0.0
    %149 = vmatprep.subr.mxu0 0.0
    %150 = vmatpush1.msra.mxu0 0.0
    %151 = vmatprep.subr.mxu0 0.0
    %152 = vmatpush1.msra.mxu0 0.0
    %153 = vmatprep.subr.mxu0 0.0
    %154 = vmatpush1.msra.mxu0 0.0
    %155 = vmatprep.subr.mxu0 0.0
    %156 = vmatpush1.msra.mxu0 0.0
    %157 = vmatprep.subr.mxu0 0.0
    %158 = vmatpush1.msra.mxu0 0.0
    %159 = vmatprep.subr.mxu0 0.0
    %160 = vmatpush1.msra.mxu0 0.0
    %161 = vmatprep.mubr.f32.mxu0 0.0
    %162 = vmatmul.mubr.f32.gmra.mrb[0].mxu0 %v95
    %v163 = vpop.f32.mrb[0].mxu0
    %v164 = vadd.f32 0.0, %v163
    %v165 = vpop.f32.mrb[0].mxu0
    %166 = vdwg.mxu0
    %167 = vmatprep.subr.mxu0 0.0
    %168 = vmatpush1.msra.mxu0 %v72
    %169 = vmatprep.subr.mxu0 0.0
    %170 = vmatpush1.msra.mxu0 0.0
    %171 = vmatprep.subr.mxu0 0.0
    %172 = vmatpush1.msra.mxu0 0.0
    %173 = vmatprep.subr.mxu0 0.0
    %174 = vmatpush1.msra.mxu0 0.0
    %175 = vmatprep.subr.mxu0 0.0
    %176 = vmatpush1.msra.mxu0 0.0
    %177 = vmatprep.subr.mxu0 0.0
    %178 = vmatpush1.msra.mxu0 0.0
    %179 = vmatprep.subr.mxu0 0.0
    %180 = vmatpush1.msra.mxu0 0.0
    %181 = vmatprep.subr.mxu0 0.0
    %182 = vmatpush1.msra.mxu0 0.0
    %183 = vmatprep.subr.mxu0 0.0
    %184 = vmatpush1.msra.mxu0 0.0
    %185 = vmatprep.subr.mxu0 0.0
    %186 = vmatpush1.msra.mxu0 0.0
    %187 = vmatprep.subr.mxu0 0.0
    %188 = vmatpush1.msra.mxu0 0.0
    %189 = vmatprep.subr.mxu0 0.0
    %190 = vmatpush1.msra.mxu0 0.0
    %191 = vmatprep.subr.mxu0 0.0
    %192 = vmatpush1.msra.mxu0 0.0
    %193 = vmatprep.subr.mxu0 0.0
    %194 = vmatpush1.msra.mxu0 0.0
    %195 = vmatprep.subr.mxu0 0.0
    %196 = vmatpush1.msra.mxu0 0.0
    %197 = vmatprep.subr.mxu0 0.0
    %198 = vmatpush1.msra.mxu0 0.0
    %199 = vmatprep.subr.mxu0 0.0
    %200 = vmatpush1.msra.mxu0 0.0
    %201 = vmatprep.subr.mxu0 0.0
    %202 = vmatpush1.msra.mxu0 0.0
    %203 = vmatprep.subr.mxu0 0.0
    %204 = vmatpush1.msra.mxu0 0.0
    %205 = vmatprep.subr.mxu0 0.0
    %206 = vmatpush1.msra.mxu0 0.0
    %207 = vmatprep.subr.mxu0 0.0
    %208 = vmatpush1.msra.mxu0 0.0
    %209 = vmatprep.subr.mxu0 0.0
    %210 = vmatpush1.msra.mxu0 0.0
    %211 = vmatprep.subr.mxu0 0.0
    %212 = vmatpush1.msra.mxu0 0.0
    %213 = vmatprep.subr.mxu0 0.0
    %214 = vmatpush1.msra.mxu0 0.0
    %215 = vmatprep.subr.mxu0 0.0
    %216 = vmatpush1.msra.mxu0 0.0
    %217 = vmatprep.subr.mxu0 0.0
    %218 = vmatpush1.msra.mxu0 0.0
    %219 = vmatprep.subr.mxu0 0.0
    %220 = vmatpush1.msra.mxu0 0.0
    %221 = vmatprep.subr.mxu0 0.0
    %222 = vmatpush1.msra.mxu0 0.0
    %223 = vmatprep.subr.mxu0 0.0
    %224 = vmatpush1.msra.mxu0 0.0
    %225 = vmatprep.subr.mxu0 0.0
    %226 = vmatpush1.msra.mxu0 0.0
    %227 = vmatprep.subr.mxu0 0.0
    %228 = vmatpush1.msra.mxu0 0.0
    %229 = vmatprep.subr.mxu0 0.0
    %230 = vmatpush1.msra.mxu0 0.0
    %231 = vmatprep.mubr.f32.mxu0 0.0
    %232 = vmatmul.mubr.f32.gmra.mrb[0].mxu0 %v95
    %v233 = vpop.f32.mrb[0].mxu0
    %v234 = vadd.f32 0.0, %v233
    %v235 = vpop.f32.mrb[0].mxu0
    %236 = vdwg.mxu0
    %237 = vmatprep.subr.mxu0 0.0
    %238 = vmatpush1.msra.mxu0 %v73
    %239 = vmatprep.subr.mxu0 0.0
    %240 = vmatpush1.msra.mxu0 0.0
    %241 = vmatprep.subr.mxu0 0.0
    %242 = vmatpush1.msra.mxu0 0.0
    %243 = vmatprep.subr.mxu0 0.0
    %244 = vmatpush1.msra.mxu0 0.0
    %245 = vmatprep.subr.mxu0 0.0
    %246 = vmatpush1.msra.mxu0 0.0
    %247 = vmatprep.subr.mxu0 0.0
    %248 = vmatpush1.msra.mxu0 0.0
    %249 = vmatprep.subr.mxu0 0.0
    %250 = vmatpush1.msra.mxu0 0.0
    %251 = vmatprep.subr.mxu0 0.0
    %252 = vmatpush1.msra.mxu0 0.0
    %253 = vmatprep.subr.mxu0 0.0
    %254 = vmatpush1.msra.mxu0 0.0
    %255 = vmatprep.subr.mxu0 0.0
    %256 = vmatpush1.msra.mxu0 0.0
    %257 = vmatprep.subr.mxu0 0.0
    %258 = vmatpush1.msra.mxu0 0.0
    %259 = vmatprep.subr.mxu0 0.0
    %260 = vmatpush1.msra.mxu0 0.0
    %261 = vmatprep.subr.mxu0 0.0
    %262 = vmatpush1.msra.mxu0 0.0
    %263 = vmatprep.subr.mxu0 0.0
    %264 = vmatpush1.msra.mxu0 0.0
    %265 = vmatprep.subr.mxu0 0.0
    %266 = vmatpush1.msra.mxu0 0.0
    %267 = vmatprep.subr.mxu0 0.0
    %268 = vmatpush1.msra.mxu0 0.0
    %269 = vmatprep.subr.mxu0 0.0
    %270 = vmatpush1.msra.mxu0 0.0
    %271 = vmatprep.subr.mxu0 0.0
    %272 = vmatpush1.msra.mxu0 0.0
    %273 = vmatprep.subr.mxu0 0.0
    %274 = vmatpush1.msra.mxu0 0.0
    %275 = vmatprep.subr.mxu0 0.0
    %276 = vmatpush1.msra.mxu0 0.0
    %277 = vmatprep.subr.mxu0 0.0
    %278 = vmatpush1.msra.mxu0 0.0
    %279 = vmatprep.subr.mxu0 0.0
    %280 = vmatpush1.msra.mxu0 0.0
    %281 = vmatprep.subr.mxu0 0.0
    %282 = vmatpush1.msra.mxu0 0.0
    %283 = vmatprep.subr.mxu0 0.0
    %284 = vmatpush1.msra.mxu0 0.0
    %285 = vmatprep.subr.mxu0 0.0
    %286 = vmatpush1.msra.mxu0 0.0
    %287 = vmatprep.subr.mxu0 0.0
    %288 = vmatpush1.msra.mxu0 0.0
    %289 = vmatprep.subr.mxu0 0.0
    %290 = vmatpush1.msra.mxu0 0.0
    %291 = vmatprep.subr.mxu0 0.0
    %292 = vmatpush1.msra.mxu0 0.0
    %293 = vmatprep.subr.mxu0 0.0
    %294 = vmatpush1.msra.mxu0 0.0
    %295 = vmatprep.subr.mxu0 0.0
    %296 = vmatpush1.msra.mxu0 0.0
    %297 = vmatprep.subr.mxu0 0.0
    %298 = vmatpush1.msra.mxu0 0.0
    %299 = vmatprep.subr.mxu0 0.0
    %300 = vmatpush1.msra.mxu0 0.0
    %301 = vmatprep.mubr.f32.mxu0 0.0
    %302 = vmatmul.mubr.f32.gmra.mrb[0].mxu0 %v95
    %v303 = vpop.f32.mrb[0].mxu0
    %v304 = vadd.f32 0.0, %v303
    %v305 = vpop.f32.mrb[0].mxu0
    %306 = vdwg.mxu0
    %307 = vmatprep.subr.mxu0 0.0
    %308 = vmatpush1.msra.mxu0 %v74
    %309 = vmatprep.subr.mxu0 0.0
    %310 = vmatpush1.msra.mxu0 0.0
    %311 = vmatprep.subr.mxu0 0.0
    %312 = vmatpush1.msra.mxu0 0.0
    %313 = vmatprep.subr.mxu0 0.0
    %314 = vmatpush1.msra.mxu0 0.0
    %315 = vmatprep.subr.mxu0 0.0
    %316 = vmatpush1.msra.mxu0 0.0
    %317 = vmatprep.subr.mxu0 0.0
    %318 = vmatpush1.msra.mxu0 0.0
    %319 = vmatprep.subr.mxu0 0.0
    %320 = vmatpush1.msra.mxu0 0.0
    %321 = vmatprep.subr.mxu0 0.0
    %322 = vmatpush1.msra.mxu0 0.0
    %323 = vmatprep.subr.mxu0 0.0
    %324 = vmatpush1.msra.mxu0 0.0
    %325 = vmatprep.subr.mxu0 0.0
    %326 = vmatpush1.msra.mxu0 0.0
    %327 = vmatprep.subr.mxu0 0.0
    %328 = vmatpush1.msra.mxu0 0.0
    %329 = vmatprep.subr.mxu0 0.0
    %330 = vmatpush1.msra.mxu0 0.0
    %331 = vmatprep.subr.mxu0 0.0
    %332 = vmatpush1.msra.mxu0 0.0
    %333 = vmatprep.subr.mxu0 0.0
    %334 = vmatpush1.msra.mxu0 0.0
    %335 = vmatprep.subr.mxu0 0.0
    %336 = vmatpush1.msra.mxu0 0.0
    %337 = vmatprep.subr.mxu0 0.0
    %338 = vmatpush1.msra.mxu0 0.0
    %339 = vmatprep.subr.mxu0 0.0
    %340 = vmatpush1.msra.mxu0 0.0
    %341 = vmatprep.subr.mxu0 0.0
    %342 = vmatpush1.msra.mxu0 0.0
    %343 = vmatprep.subr.mxu0 0.0
    %344 = vmatpush1.msra.mxu0 0.0
    %345 = vmatprep.subr.mxu0 0.0
    %346 = vmatpush1.msra.mxu0 0.0
    %347 = vmatprep.subr.mxu0 0.0
    %348 = vmatpush1.msra.mxu0 0.0
    %349 = vmatprep.subr.mxu0 0.0
    %350 = vmatpush1.msra.mxu0 0.0
    %351 = vmatprep.subr.mxu0 0.0
    %352 = vmatpush1.msra.mxu0 0.0
    %353 = vmatprep.subr.mxu0 0.0
    %354 = vmatpush1.msra.mxu0 0.0
    %355 = vmatprep.subr.mxu0 0.0
    %356 = vmatpush1.msra.mxu0 0.0
    %357 = vmatprep.subr.mxu0 0.0
    %358 = vmatpush1.msra.mxu0 0.0
    %359 = vmatprep.subr.mxu0 0.0
    %360 = vmatpush1.msra.mxu0 0.0
    %361 = vmatprep.subr.mxu0 0.0
    %362 = vmatpush1.msra.mxu0 0.0
    %363 = vmatprep.subr.mxu0 0.0
    %364 = vmatpush1.msra.mxu0 0.0
    %365 = vmatprep.subr.mxu0 0.0
    %366 = vmatpush1.msra.mxu0 0.0
    %367 = vmatprep.subr.mxu0 0.0
    %368 = vmatpush1.msra.mxu0 0.0
    %369 = vmatprep.subr.mxu0 0.0
    %370 = vmatpush1.msra.mxu0 0.0
    %371 = vmatprep.mubr.f32.mxu0 0.0
    %372 = vmatmul.mubr.f32.gmra.mrb[0].mxu0 %v95
    %v373 = vpop.f32.mrb[0].mxu0
    %v374 = vadd.f32 0.0, %v373
    %v375 = vpop.f32.mrb[0].mxu0
    %376 = vdwg.mxu0
    %v377 = vmul.f32 %v164, 0.5
    %v378 = vmul.f32 %v234, 0.5
    %v379 = vmul.f32 %v304, 0.5
    %v380 = vmul.f32 %v374, 0.5
    %v381 = vmul.f32 %v377, %v377
    %v382 = vmul.f32 %v378, %v378
    %v383 = vmul.f32 %v379, %v379
    %v384 = vmul.f32 %v380, %v380
    %vm385 = vcmask 257024
    %v386 = vsel %vm385, %v381, 0.0
    %387 = vadd.xlane.f32.xlu0 %v386
    %v388 = vpop.xlane.xlu0 %387
    %v389 = vsel %vm385, %v382, 0.0
    %390 = vadd.xlane.f32.xlu0 %v389
    %v391 = vpop.xlane.xlu0 %390
    %v392 = vsel %vm385, %v383, 0.0
    %393 = vadd.xlane.f32.xlu0 %v392
    %v394 = vpop.xlane.xlu0 %393
    %v395 = vsel %vm385, %v384, 0.0
    %396 = vadd.xlane.f32.xlu0 %v395
    %v397 = vpop.xlane.xlu0 %396
    %v398 = vmax.f32 %v388, 1e-24
    %v399 = vmax.f32 %v391, 1e-24
    %v400 = vmax.f32 %v394, 1e-24
    %v401 = vmax.f32 %v397, 1e-24
    %v402 = vrsqrt.pop %v398
    %v403 = vrsqrt.pop %v399
    %v404 = vrsqrt.pop %v400
    %v405 = vrsqrt.pop %v401
    %v406 = vmul.f32 %v377, %v402
    %v407 = vmul.f32 %v378, %v403
    %v408 = vmul.f32 %v379, %v404
    %v409 = vmul.f32 %v380, %v405
    %v410 = vld [vmem:[#allocation4] sm:$0xff]
    %v411 = vld [vmem:[#allocation4 + $0x8] sm:$0xff]
    %v412 = vld [vmem:[#allocation4 + $0x10] sm:$0xff]
    %v413 = vld [vmem:[#allocation4 + $0x18] sm:$0xff]
    %v414 = vmul.f32 %v410, %v410
    %v415 = vmul.f32 %v411, %v411
    %v416 = vmul.f32 %v412, %v412
    %v417 = vmul.f32 %v413, %v413
    %v418 = vsel %vm50, %v414, 0.0
    %419 = vadd.xlane.f32.xlu0 %v418
    %v420 = vpop.xlane.xlu0 %419
    %v421 = vsel %vm50, %v415, 0.0
    %422 = vadd.xlane.f32.xlu0 %v421
    %v423 = vpop.xlane.xlu0 %422
    %v424 = vsel %vm50, %v416, 0.0
    %425 = vadd.xlane.f32.xlu0 %v424
    %v426 = vpop.xlane.xlu0 %425
    %v427 = vsel %vm50, %v417, 0.0
    %428 = vadd.xlane.f32.xlu0 %v427
    %v429 = vpop.xlane.xlu0 %428
    %v430 = vmax.f32 %v420, 1e-24
    %v431 = vmax.f32 %v423, 1e-24
    %v432 = vmax.f32 %v426, 1e-24
    %v433 = vmax.f32 %v429, 1e-24
    %v434 = vrsqrt.pop %v430
    %v435 = vrsqrt.pop %v431
    %v436 = vrsqrt.pop %v432
    %v437 = vrsqrt.pop %v433
    %s438 = sld [smem:[#allocation3]]
    %v439 = vstv %s438
    %v440 = vmul.f32 %v434, %v439
    %v441 = vmul.f32 %v435, %v439
    %v442 = vmul.f32 %v436, %v439
    %v443 = vmul.f32 %v437, %v439
    %v444 = vmul.f32 %v410, %v440
    %v445 = vmul.f32 %v411, %v441
    %v446 = vmul.f32 %v412, %v442
    %v447 = vmul.f32 %v413, %v443
    %v449 = vsel %vm50, %v406, 0
    %v452 = vsel %vm50, %v444, 0
    %454 = vmatprep.subr.mxu0 0.0
    %455 = vmatpush1.xpose.msra.mxu0 %v452
    %456 = vmatprep.subr.mxu0 0.0
    %457 = vmatpush1.xpose.msra.mxu0 0.0
    %458 = vmatprep.subr.mxu0 0.0
    %459 = vmatpush1.xpose.msra.mxu0 0.0
    %460 = vmatprep.subr.mxu0 0.0
    %461 = vmatpush1.xpose.msra.mxu0 0.0
    %462 = vmatprep.subr.mxu0 0.0
    %463 = vmatpush1.xpose.msra.mxu0 0.0
    %464 = vmatprep.subr.mxu0 0.0
    %465 = vmatpush1.xpose.msra.mxu0 0.0
    %466 = vmatprep.subr.mxu0 0.0
    %467 = vmatpush1.xpose.msra.mxu0 0.0
    %468 = vmatprep.subr.mxu0 0.0
    %469 = vmatpush1.xpose.msra.mxu0 0.0
    %470 = vmatprep.subr.mxu0 0.0
    %471 = vmatpush1.xpose.msra.mxu0 0.0
    %472 = vmatprep.subr.mxu0 0.0
    %473 = vmatpush1.xpose.msra.mxu0 0.0
    %474 = vmatprep.subr.mxu0 0.0
    %475 = vmatpush1.xpose.msra.mxu0 0.0
    %476 = vmatprep.subr.mxu0 0.0
    %477 = vmatpush1.xpose.msra.mxu0 0.0
    %478 = vmatprep.subr.mxu0 0.0
    %479 = vmatpush1.xpose.msra.mxu0 0.0
    %480 = vmatprep.subr.mxu0 0.0
    %481 = vmatpush1.xpose.msra.mxu0 0.0
    %482 = vmatprep.subr.mxu0 0.0
    %483 = vmatpush1.xpose.msra.mxu0 0.0
    %484 = vmatprep.subr.mxu0 0.0
    %485 = vmatpush1.xpose.msra.mxu0 0.0
    %486 = vmatprep.subr.mxu0 0.0
    %487 = vmatpush1.xpose.msra.mxu0 0.0
    %488 = vmatprep.subr.mxu0 0.0
    %489 = vmatpush1.xpose.msra.mxu0 0.0
    %490 = vmatprep.subr.mxu0 0.0
    %491 = vmatpush1.xpose.msra.mxu0 0.0
    %492 = vmatprep.subr.mxu0 0.0
    %493 = vmatpush1.xpose.msra.mxu0 0.0
    %494 = vmatprep.subr.mxu0 0.0
    %495 = vmatpush1.xpose.msra.mxu0 0.0
    %496 = vmatprep.subr.mxu0 0.0
    %497 = vmatpush1.xpose.msra.mxu0 0.0
    %498 = vmatprep.subr.mxu0 0.0
    %499 = vmatpush1.xpose.msra.mxu0 0.0
    %500 = vmatprep.subr.mxu0 0.0
    %501 = vmatpush1.xpose.msra.mxu0 0.0
    %502 = vmatprep.subr.mxu0 0.0
    %503 = vmatpush1.xpose.msra.mxu0 0.0
    %504 = vmatprep.subr.mxu0 0.0
    %505 = vmatpush1.xpose.msra.mxu0 0.0
    %506 = vmatprep.subr.mxu0 0.0
    %507 = vmatpush1.xpose.msra.mxu0 0.0
    %508 = vmatprep.subr.mxu0 0.0
    %509 = vmatpush1.xpose.msra.mxu0 0.0
    %510 = vmatprep.subr.mxu0 0.0
    %511 = vmatpush1.xpose.msra.mxu0 0.0
    %512 = vmatprep.subr.mxu0 0.0
    %513 = vmatpush1.xpose.msra.mxu0 0.0
    %514 = vmatprep.subr.mxu0 0.0
    %515 = vmatpush1.xpose.msra.mxu0 0.0
    %516 = vmatprep.subr.mxu0 0.0
    %517 = vmatpush1.xpose.msra.mxu0 0.0
    %518 = vmatprep.mubr.f32.mxu0 0.0
    %519 = vmatmul.mubr.f32.gmra.mrb[0].mxu0 %v449
    %v520 = vpop.f32.mrb[0].mxu0
    %v521 = vadd.f32 0.0, %v520
    %v522 = vpop.f32.mrb[0].mxu0
    %523 = vdwg.mxu0
    %v525 = vsel %vm50, %v407, 0
    %v528 = vsel %vm50, %v445, 0
    %530 = vmatprep.subr.mxu0 0.0
    %531 = vmatpush1.xpose.msra.mxu0 %v528
    %532 = vmatprep.subr.mxu0 0.0
    %533 = vmatpush1.xpose.msra.mxu0 0.0
    %534 = vmatprep.subr.mxu0 0.0
    %535 = vmatpush1.xpose.msra.mxu0 0.0
    %536 = vmatprep.subr.mxu0 0.0
    %537 = vmatpush1.xpose.msra.mxu0 0.0
    %538 = vmatprep.subr.mxu0 0.0
    %539 = vmatpush1.xpose.msra.mxu0 0.0
    %540 = vmatprep.subr.mxu0 0.0
    %541 = vmatpush1.xpose.msra.mxu0 0.0
    %542 = vmatprep.subr.mxu0 0.0
    %543 = vmatpush1.xpose.msra.mxu0 0.0
    %544 = vmatprep.subr.mxu0 0.0
    %545 = vmatpush1.xpose.msra.mxu0 0.0
    %546 = vmatprep.subr.mxu0 0.0
    %547 = vmatpush1.xpose.msra.mxu0 0.0
    %548 = vmatprep.subr.mxu0 0.0
    %549 = vmatpush1.xpose.msra.mxu0 0.0
    %550 = vmatprep.subr.mxu0 0.0
    %551 = vmatpush1.xpose.msra.mxu0 0.0
    %552 = vmatprep.subr.mxu0 0.0
    %553 = vmatpush1.xpose.msra.mxu0 0.0
    %554 = vmatprep.subr.mxu0 0.0
    %555 = vmatpush1.xpose.msra.mxu0 0.0
    %556 = vmatprep.subr.mxu0 0.0
    %557 = vmatpush1.xpose.msra.mxu0 0.0
    %558 = vmatprep.subr.mxu0 0.0
    %559 = vmatpush1.xpose.msra.mxu0 0.0
    %560 = vmatprep.subr.mxu0 0.0
    %561 = vmatpush1.xpose.msra.mxu0 0.0
    %562 = vmatprep.subr.mxu0 0.0
    %563 = vmatpush1.xpose.msra.mxu0 0.0
    %564 = vmatprep.subr.mxu0 0.0
    %565 = vmatpush1.xpose.msra.mxu0 0.0
    %566 = vmatprep.subr.mxu0 0.0
    %567 = vmatpush1.xpose.msra.mxu0 0.0
    %568 = vmatprep.subr.mxu0 0.0
    %569 = vmatpush1.xpose.msra.mxu0 0.0
    %570 = vmatprep.subr.mxu0 0.0
    %571 = vmatpush1.xpose.msra.mxu0 0.0
    %572 = vmatprep.subr.mxu0 0.0
    %573 = vmatpush1.xpose.msra.mxu0 0.0
    %574 = vmatprep.subr.mxu0 0.0
    %575 = vmatpush1.xpose.msra.mxu0 0.0
    %576 = vmatprep.subr.mxu0 0.0
    %577 = vmatpush1.xpose.msra.mxu0 0.0
    %578 = vmatprep.subr.mxu0 0.0
    %579 = vmatpush1.xpose.msra.mxu0 0.0
    %580 = vmatprep.subr.mxu0 0.0
    %581 = vmatpush1.xpose.msra.mxu0 0.0
    %582 = vmatprep.subr.mxu0 0.0
    %583 = vmatpush1.xpose.msra.mxu0 0.0
    %584 = vmatprep.subr.mxu0 0.0
    %585 = vmatpush1.xpose.msra.mxu0 0.0
    %586 = vmatprep.subr.mxu0 0.0
    %587 = vmatpush1.xpose.msra.mxu0 0.0
    %588 = vmatprep.subr.mxu0 0.0
    %589 = vmatpush1.xpose.msra.mxu0 0.0
    %590 = vmatprep.subr.mxu0 0.0
    %591 = vmatpush1.xpose.msra.mxu0 0.0
    %592 = vmatprep.subr.mxu0 0.0
    %593 = vmatpush1.xpose.msra.mxu0 0.0
    %594 = vmatprep.mubr.f32.mxu0 0.0
    %595 = vmatmul.mubr.f32.gmra.mrb[0].mxu0 %v525
    %v596 = vpop.f32.mrb[0].mxu0
    %v597 = vadd.f32 0.0, %v596
    %v598 = vpop.f32.mrb[0].mxu0
    %599 = vdwg.mxu0
    %v601 = vsel %vm50, %v408, 0
    %v604 = vsel %vm50, %v446, 0
    %606 = vmatprep.subr.mxu0 0.0
    %607 = vmatpush1.xpose.msra.mxu0 %v604
    %608 = vmatprep.subr.mxu0 0.0
    %609 = vmatpush1.xpose.msra.mxu0 0.0
    %610 = vmatprep.subr.mxu0 0.0
    %611 = vmatpush1.xpose.msra.mxu0 0.0
    %612 = vmatprep.subr.mxu0 0.0
    %613 = vmatpush1.xpose.msra.mxu0 0.0
    %614 = vmatprep.subr.mxu0 0.0
    %615 = vmatpush1.xpose.msra.mxu0 0.0
    %616 = vmatprep.subr.mxu0 0.0
    %617 = vmatpush1.xpose.msra.mxu0 0.0
    %618 = vmatprep.subr.mxu0 0.0
    %619 = vmatpush1.xpose.msra.mxu0 0.0
    %620 = vmatprep.subr.mxu0 0.0
    %621 = vmatpush1.xpose.msra.mxu0 0.0
    %622 = vmatprep.subr.mxu0 0.0
    %623 = vmatpush1.xpose.msra.mxu0 0.0
    %624 = vmatprep.subr.mxu0 0.0
    %625 = vmatpush1.xpose.msra.mxu0 0.0
    %626 = vmatprep.subr.mxu0 0.0
    %627 = vmatpush1.xpose.msra.mxu0 0.0
    %628 = vmatprep.subr.mxu0 0.0
    %629 = vmatpush1.xpose.msra.mxu0 0.0
    %630 = vmatprep.subr.mxu0 0.0
    %631 = vmatpush1.xpose.msra.mxu0 0.0
    %632 = vmatprep.subr.mxu0 0.0
    %633 = vmatpush1.xpose.msra.mxu0 0.0
    %634 = vmatprep.subr.mxu0 0.0
    %635 = vmatpush1.xpose.msra.mxu0 0.0
    %636 = vmatprep.subr.mxu0 0.0
    %637 = vmatpush1.xpose.msra.mxu0 0.0
    %638 = vmatprep.subr.mxu0 0.0
    %639 = vmatpush1.xpose.msra.mxu0 0.0
    %640 = vmatprep.subr.mxu0 0.0
    %641 = vmatpush1.xpose.msra.mxu0 0.0
    %642 = vmatprep.subr.mxu0 0.0
    %643 = vmatpush1.xpose.msra.mxu0 0.0
    %644 = vmatprep.subr.mxu0 0.0
    %645 = vmatpush1.xpose.msra.mxu0 0.0
    %646 = vmatprep.subr.mxu0 0.0
    %647 = vmatpush1.xpose.msra.mxu0 0.0
    %648 = vmatprep.subr.mxu0 0.0
    %649 = vmatpush1.xpose.msra.mxu0 0.0
    %650 = vmatprep.subr.mxu0 0.0
    %651 = vmatpush1.xpose.msra.mxu0 0.0
    %652 = vmatprep.subr.mxu0 0.0
    %653 = vmatpush1.xpose.msra.mxu0 0.0
    %654 = vmatprep.subr.mxu0 0.0
    %655 = vmatpush1.xpose.msra.mxu0 0.0
    %656 = vmatprep.subr.mxu0 0.0
    %657 = vmatpush1.xpose.msra.mxu0 0.0
    %658 = vmatprep.subr.mxu0 0.0
    %659 = vmatpush1.xpose.msra.mxu0 0.0
    %660 = vmatprep.subr.mxu0 0.0
    %661 = vmatpush1.xpose.msra.mxu0 0.0
    %662 = vmatprep.subr.mxu0 0.0
    %663 = vmatpush1.xpose.msra.mxu0 0.0
    %664 = vmatprep.subr.mxu0 0.0
    %665 = vmatpush1.xpose.msra.mxu0 0.0
    %666 = vmatprep.subr.mxu0 0.0
    %667 = vmatpush1.xpose.msra.mxu0 0.0
    %668 = vmatprep.subr.mxu0 0.0
    %669 = vmatpush1.xpose.msra.mxu0 0.0
    %670 = vmatprep.mubr.f32.mxu0 0.0
    %671 = vmatmul.mubr.f32.gmra.mrb[0].mxu0 %v601
    %v672 = vpop.f32.mrb[0].mxu0
    %v673 = vadd.f32 0.0, %v672
    %v674 = vpop.f32.mrb[0].mxu0
    %675 = vdwg.mxu0
    %v677 = vsel %vm50, %v409, 0
    %v680 = vsel %vm50, %v447, 0
    %682 = vmatprep.subr.mxu0 0.0
    %683 = vmatpush1.xpose.msra.mxu0 %v680
    %684 = vmatprep.subr.mxu0 0.0
    %685 = vmatpush1.xpose.msra.mxu0 0.0
    %686 = vmatprep.subr.mxu0 0.0
    %687 = vmatpush1.xpose.msra.mxu0 0.0
    %688 = vmatprep.subr.mxu0 0.0
    %689 = vmatpush1.xpose.msra.mxu0 0.0
    %690 = vmatprep.subr.mxu0 0.0
    %691 = vmatpush1.xpose.msra.mxu0 0.0
    %692 = vmatprep.subr.mxu0 0.0
    %693 = vmatpush1.xpose.msra.mxu0 0.0
    %694 = vmatprep.subr.mxu0 0.0
    %695 = vmatpush1.xpose.msra.mxu0 0.0
    %696 = vmatprep.subr.mxu0 0.0
    %697 = vmatpush1.xpose.msra.mxu0 0.0
    %698 = vmatprep.subr.mxu0 0.0
    %699 = vmatpush1.xpose.msra.mxu0 0.0
    %700 = vmatprep.subr.mxu0 0.0
    %701 = vmatpush1.xpose.msra.mxu0 0.0
    %702 = vmatprep.subr.mxu0 0.0
    %703 = vmatpush1.xpose.msra.mxu0 0.0
    %704 = vmatprep.subr.mxu0 0.0
    %705 = vmatpush1.xpose.msra.mxu0 0.0
    %706 = vmatprep.subr.mxu0 0.0
    %707 = vmatpush1.xpose.msra.mxu0 0.0
    %708 = vmatprep.subr.mxu0 0.0
    %709 = vmatpush1.xpose.msra.mxu0 0.0
    %710 = vmatprep.subr.mxu0 0.0
    %711 = vmatpush1.xpose.msra.mxu0 0.0
    %712 = vmatprep.subr.mxu0 0.0
    %713 = vmatpush1.xpose.msra.mxu0 0.0
    %714 = vmatprep.subr.mxu0 0.0
    %715 = vmatpush1.xpose.msra.mxu0 0.0
    %716 = vmatprep.subr.mxu0 0.0
    %717 = vmatpush1.xpose.msra.mxu0 0.0
    %718 = vmatprep.subr.mxu0 0.0
    %719 = vmatpush1.xpose.msra.mxu0 0.0
    %720 = vmatprep.subr.mxu0 0.0
    %721 = vmatpush1.xpose.msra.mxu0 0.0
    %722 = vmatprep.subr.mxu0 0.0
    %723 = vmatpush1.xpose.msra.mxu0 0.0
    %724 = vmatprep.subr.mxu0 0.0
    %725 = vmatpush1.xpose.msra.mxu0 0.0
    %726 = vmatprep.subr.mxu0 0.0
    %727 = vmatpush1.xpose.msra.mxu0 0.0
    %728 = vmatprep.subr.mxu0 0.0
    %729 = vmatpush1.xpose.msra.mxu0 0.0
    %730 = vmatprep.subr.mxu0 0.0
    %731 = vmatpush1.xpose.msra.mxu0 0.0
    %732 = vmatprep.subr.mxu0 0.0
    %733 = vmatpush1.xpose.msra.mxu0 0.0
    %734 = vmatprep.subr.mxu0 0.0
    %735 = vmatpush1.xpose.msra.mxu0 0.0
    %736 = vmatprep.subr.mxu0 0.0
    %737 = vmatpush1.xpose.msra.mxu0 0.0
    %738 = vmatprep.subr.mxu0 0.0
    %739 = vmatpush1.xpose.msra.mxu0 0.0
    %740 = vmatprep.subr.mxu0 0.0
    %741 = vmatpush1.xpose.msra.mxu0 0.0
    %742 = vmatprep.subr.mxu0 0.0
    %743 = vmatpush1.xpose.msra.mxu0 0.0
    %744 = vmatprep.subr.mxu0 0.0
    %745 = vmatpush1.xpose.msra.mxu0 0.0
    %746 = vmatprep.mubr.f32.mxu0 0.0
    %747 = vmatmul.mubr.f32.gmra.mrb[0].mxu0 %v677
    %v748 = vpop.f32.mrb[0].mxu0
    %v749 = vadd.f32 0.0, %v748
    %v750 = vpop.f32.mrb[0].mxu0
    %751 = vdwg.mxu0
    %vm752 = vcmask 60416
    %753 = vst.msk [vmem:[#allocation9] sm:$0xf] %vm752, %v521
    %754 = vst.msk [vmem:[#allocation9 + $0x4] sm:$0xf] %vm752, %v597
    %755 = vst.msk [vmem:[#allocation9 + $0x8] sm:$0xf] %vm752, %v673
    %756 = vst.msk [vmem:[#allocation9 + $0xc] sm:$0xf] %vm752, %v749
    // Predicated region
    $region18: #{tpu_custom_call.1} parent=1 // pred_check
      _
    $region19: #{tpu_custom_call.1} parent=1 // pred_check_branch
      %758 = sbr.rel (0) target = $region21
    $region20: #{tpu_custom_call.1} parent=1 // pred_region
      %s760 = ssub.s32 256, 256
      %761 = vsyncadd [#allocation6], %s760
      %s762 = sshll.u32 [#allocation9], 4
      %s763 = int_to_ptr.vmem [resolvable:$true] %s762
      %768 = dma.vmem_to_hbm [thread:$0]  %s763, 256, %s3, [#allocation6], 64, 64, 4
    $region21: #{tpu_custom_call.1} parent=1 // pred_fallthru
      _
    // Predicated region
    $region22: #{tpu_custom_call.1} parent=1 // pred_check
      _
    $region23: #{tpu_custom_call.1} parent=1 // pred_check_branch
      %770 = sbr.rel (0) target = $region25
    $region24: #{tpu_custom_call.1} parent=1 // pred_region
      %771 = dma.done [#allocation6], 256
    $region25: #{tpu_custom_call.1} parent=1 // pred_fallthru
      _
    %772 = vsyncpa [#allocation5], 1
    %773 = vsyncpa [#allocation8], 1
    %774 = vsyncpa [#allocation6], 1

</llo_original>
